<compile_context>
chip_gen: v7x
topology: tpu7x:2x2x1
jax: 0.10.0
libtpu: 0.0.40
codegen_flags: <defaults>
</compile_context>

<pallas_src>
import functools

import jax
import jax.numpy as jnp
from jax.experimental import pallas as pl
from jax.experimental.pallas import tpu as pltpu

_LANES = 128
_SUBLANES = 8
_CHUNK_ROWS = 128            # rows per inner-loop chunk (16 vregs per f32 array)
_DEFAULT_TILE_ROWS = 8192    # 4 MiB per f32 input block
_VMEM_LIMIT_BYTES = 40 * 1024 * 1024


def _bce_tile_kernel(pred_ref, tgt_ref, out_ref, *, pos_weight, tile_rows,
                     chunk_rows, tiles_per_core, num_tiles, valid_rows,
                     need_mask):
    p = pl.program_id(0)   # partial-sum split (2-way when n_tiles is even)
    j = pl.program_id(1)   # sequential reduction axis

    # Zero this partial-sum accumulator at the start of its slice of tiles.
    @pl.when(j == 0)
    def _():
        out_ref[...] = jnp.zeros_like(out_ref)

    n_chunks = tile_rows // chunk_rows
    i_tile = p * tiles_per_core + j

    def tile_partial(masked):
        """Sum BCE loss over this VMEM block into a (1, 8, 128) accumulator."""
        def body(c, acc):
            r = pl.multiple_of(c * chunk_rows, chunk_rows)
            x = pred_ref[pl.ds(r, chunk_rows), :].astype(jnp.float32)
            t = tgt_ref[pl.ds(r, chunk_rows), :].astype(jnp.float32)
            # Numerically stable BCE-with-logits, PyTorch pos_weight form:
            #   loss = (1 - t) * x + (1 + (pw - 1) * t) * softplus(-x)
            softplus_neg = jnp.maximum(-x, 0.0) + jnp.log1p(jnp.exp(-jnp.abs(x)))
            loss = (1.0 - t) * x + (1.0 + (pos_weight - 1.0) * t) * softplus_neg
            if masked:
                # Zero rows past the logical end of the data (ragged last tile).
                rid = (i_tile * tile_rows + r
                       + jax.lax.broadcasted_iota(
                           jnp.int32, (chunk_rows, _LANES), 0))
                loss = jnp.where(rid < valid_rows, loss, 0.0)
            # VPU-only partial reduce: (CR, 128) -> (1, 8, 128)
            return acc + loss.reshape(
                chunk_rows // _SUBLANES, _SUBLANES, _LANES).sum(
                    axis=0, keepdims=True)

        return jax.lax.fori_loop(
            0, n_chunks, body,
            jnp.zeros((1, _SUBLANES, _LANES), jnp.float32))

    if not need_mask:
        out_ref[...] += tile_partial(False)
    elif num_tiles == 1:
        out_ref[...] += tile_partial(True)
    else:
        is_last = i_tile == (num_tiles - 1)

        @pl.when(i_tile < num_tiles - 1)
        def _():
            out_ref[...] += tile_partial(False)

        @pl.when(is_last)
        def _():
            out_ref[...] += tile_partial(True)


def _bce_elementwise(x, t, pos_weight):
    x = x.astype(jnp.float32)
    t = t.astype(jnp.float32)
    softplus_neg = jnp.maximum(-x, 0.0) + jnp.log1p(jnp.exp(-jnp.abs(x)))
    return (1.0 - t) * x + (1.0 + (pos_weight - 1.0) * t) * softplus_neg


def bce_with_logits_loss(pred, target, num_zeros, num_ones, *,
                         tile_rows=_DEFAULT_TILE_ROWS):
    """Mean BCEWithLogitsLoss with pos_weight = num_zeros / num_ones."""
    assert pred.shape == target.shape
    pos_weight = float(num_zeros) / float(num_ones)

    n_elem = pred.size
    flat_p = pred.reshape(-1)
    flat_t = target.reshape(-1)

    rows = n_elem // _LANES
    n_main = rows * _LANES
    tail = n_elem - n_main

    if rows < _CHUNK_ROWS:
        # Tiny input (< 16K elements): kernel launch overhead dominates; jnp.
        total = jnp.sum(_bce_elementwise(flat_p, flat_t, pos_weight))
        return (total / n_elem).astype(jnp.float32)

    p2d = flat_p[:n_main].reshape(rows, _LANES)
    t2d = flat_t[:n_main].reshape(rows, _LANES)

    # Tile rows: as large as requested, never bigger than the data, always a
    # multiple of the 128-row chunk (which also satisfies bf16 (16,128) packing).
    tile_rows = max(_CHUNK_ROWS, (tile_rows // _CHUNK_ROWS) * _CHUNK_ROWS)
    tr = min(tile_rows, (rows // _CHUNK_ROWS) * _CHUNK_ROWS)
    n_tiles = pl.cdiv(rows, tr)
    need_mask = (rows % tr) != 0   # only the last tile is ragged

    # Two partial-sum rows only when the split is exact (no duplicated tiles).
    n_par = 2 if (n_tiles >= 2 and n_tiles % 2 == 0) else 1
    tiles_per_core = n_tiles // n_par

    in_idx = lambda p, j: (p * tiles_per_core + j, 0)

    kernel = functools.partial(
        _bce_tile_kernel,
        pos_weight=pos_weight,
        tile_rows=tr,
        chunk_rows=_CHUNK_ROWS,
        tiles_per_core=tiles_per_core,
        num_tiles=n_tiles,
        valid_rows=rows,
        need_mask=need_mask)

    partials = pl.pallas_call(
        kernel,
        out_shape=jax.ShapeDtypeStruct((n_par, _SUBLANES, _LANES), jnp.float32),
        grid_spec=pltpu.PrefetchScalarGridSpec(
            num_scalar_prefetch=0,
            grid=(n_par, tiles_per_core),
            in_specs=[
                pl.BlockSpec((tr, _LANES), in_idx),
                pl.BlockSpec((tr, _LANES), in_idx),
            ],
            out_specs=pl.BlockSpec((1, _SUBLANES, _LANES),
                                   lambda p, j: (p, 0, 0)),
        ),
        compiler_params=pltpu.CompilerParams(
            dimension_semantics=("parallel", "arbitrary"),
            vmem_limit_bytes=_VMEM_LIMIT_BYTES),
    )(p2d, t2d)

    total = jnp.sum(partials)
    if tail:
        total = total + jnp.sum(
            _bce_elementwise(flat_p[n_main:], flat_t[n_main:], pos_weight))
    return (total / n_elem).astype(jnp.float32)


def _reference(pred, target, num_zeros, num_ones):
    pw = float(num_zeros) / float(num_ones)
    x = pred.astype(jnp.float32)
    t = target.astype(jnp.float32)
    loss = -(pw * t * jax.nn.log_sigmoid(x) + (1.0 - t) * jax.nn.log_sigmoid(-x))
    return jnp.mean(loss)


if __name__ == "__main__":
    key = jax.random.PRNGKey(0)
    num_zeros, num_ones = 7.0, 3.0  # example class counts passed to __init__

    k1, k2, k3, k4, k5, k6 = jax.random.split(key, 6)

    # Case 1: per-point binary logits (batch=2, npoints=8192) — exact tiles.
    pred1 = jax.random.normal(k1, (2, 8192), dtype=jnp.float32) * 3.0
    tgt1 = (jax.random.uniform(k2, (2, 8192)) > 0.7).astype(jnp.float32)
    out1 = jax.block_until_ready(
        bce_with_logits_loss(pred1, tgt1, num_zeros, num_ones))
    ref1 = _reference(pred1, tgt1, num_zeros, num_ones)
    assert jnp.allclose(out1, ref1, rtol=1e-4, atol=1e-6), (out1, ref1)

    # Case 2: ragged size -> multi-tile, masked last tile, <128-element tail,
    #         2-way partial-sum split.
    pred2 = jax.random.normal(k3, (4, 33333), dtype=jnp.float32) * 3.0
    tgt2 = (jax.random.uniform(k4, (4, 33333)) > 0.5).astype(jnp.float32)
    out2 = jax.block_until_ready(
        bce_with_logits_loss(pred2, tgt2, num_zeros, num_ones))
    ref2 = _reference(pred2, tgt2, num_zeros, num_ones)
    assert jnp.allclose(out2, ref2, rtol=1e-4, atol=1e-6), (out2, ref2)

    # Case 3: bf16 inputs stay bf16 into the kernel (halved HBM bytes).
    pred3 = (jax.random.normal(k5, (2, 32768), dtype=jnp.float32) * 3.0
             ).astype(jnp.bfloat16)
    tgt3 = (jax.random.uniform(k6, (2, 32768)) > 0.6).astype(jnp.bfloat16)
    out3 = jax.block_until_ready(
        bce_with_logits_loss(pred3, tgt3, num_zeros, num_ones))
    ref3 = _reference(pred3, tgt3, num_zeros, num_ones)
    assert jnp.allclose(out3, ref3, rtol=1e-4, atol=1e-6), (out3, ref3)

    print("KERNEL_OK")
</pallas_src>

<mosaic_0001>
module attributes {stable_mosaic.version = 11 : i64} {
  func.func @_bce_tile_kernel(%arg0: i32, %arg1: i32, %arg2: memref<128x128xf32, #tpu.memory_space<vmem>>, %arg3: memref<128x128xf32, #tpu.memory_space<vmem>>, %arg4: memref<1x8x128xf32, #tpu.memory_space<vmem>>) attributes {dimension_semantics = [#tpu.dimension_semantics<parallel>, #tpu.dimension_semantics<arbitrary>], iteration_bounds = array<i64: 1, 1>, scalar_prefetch = 0 : i64, scratch_operands = 0 : i64, tpu.core_type = #tpu.core_type<tc>, window_params = [{transform_indices = @transform_0, window_bounds = array<i64: 128, 128>}, {transform_indices = @transform_1, window_bounds = array<i64: 128, 128>}, {transform_indices = @transform_2, window_bounds = array<i64: 1, 8, 128>}]} {
    %c0_i32 = arith.constant 0 : i32
    %0 = arith.cmpi eq, %arg1, %c0_i32 : i32
    %1 = arith.extui %0 : i1 to i32
    %c0_i32_0 = arith.constant 0 : i32
    %2 = arith.cmpi ne, %1, %c0_i32_0 : i32
    scf.if %2 {
      %cst_16 = arith.constant 0.000000e+00 : f32
      %36 = vector.broadcast %cst_16 : f32 to vector<1x8x128xf32>
      %c0_17 = arith.constant 0 : index
      %c0_18 = arith.constant 0 : index
      %c0_19 = arith.constant 0 : index
      %37 = vector.load %arg4[%c0_17, %c0_18, %c0_19] : memref<1x8x128xf32, #tpu.memory_space<vmem>>, vector<1x8x128xf32>
      tpu.vector_store %arg4[%c0_17, %c0_18, %c0_19], %36 {strides = array<i32>} : memref<1x8x128xf32, #tpu.memory_space<vmem>>, vector<1x8x128xf32>,
    } else {
    }
    %c0 = arith.constant 0 : index
    %c0_1 = arith.constant 0 : index
    %c0_2 = arith.constant 0 : index
    %3 = vector.load %arg4[%c0, %c0_1, %c0_2] : memref<1x8x128xf32, #tpu.memory_space<vmem>>, vector<1x8x128xf32>
    %cst = arith.constant 0.000000e+00 : f32
    %4 = vector.broadcast %cst : f32 to vector<1x8x128xf32>
    %c0_i32_3 = arith.constant 0 : i32
    %c128_i32 = arith.constant 128 : i32
    %5 = arith.muli %c0_i32_3, %c128_i32 : i32
    %6 = tpu.assume_multiple %5, 128 : i32
    %7 = arith.index_cast %6 : i32 to index
    %c0_4 = arith.constant 0 : index
    %8 = vector.load %arg2[%7, %c0_4] : memref<128x128xf32, #tpu.memory_space<vmem>>, vector<128x128xf32>
    %9 = arith.index_cast %6 : i32 to index
    %c0_5 = arith.constant 0 : index
    %10 = vector.load %arg3[%9, %c0_5] : memref<128x128xf32, #tpu.memory_space<vmem>>, vector<128x128xf32>
    %cst_6 = arith.constant 0.000000e+00 : f32
    %11 = vector.broadcast %cst_6 : f32 to vector<128x128xf32>
    %12 = arith.subf %11, %8 : vector<128x128xf32>
    %cst_7 = arith.constant 0.000000e+00 : f32
    %13 = vector.broadcast %cst_7 : f32 to vector<128x128xf32>
    %14 = arith.maximumf %12, %13 : vector<128x128xf32>
    %15 = math.absf %8 : vector<128x128xf32>
    %cst_8 = arith.constant 0.000000e+00 : f32
    %16 = vector.broadcast %cst_8 : f32 to vector<128x128xf32>
    %17 = arith.subf %16, %15 : vector<128x128xf32>
    %18 = math.exp %17 : vector<128x128xf32>
    %19 = math.log1p %18 : vector<128x128xf32>
    %20 = arith.addf %14, %19 : vector<128x128xf32>
    %cst_9 = arith.constant 1.000000e+00 : f32
    %21 = vector.broadcast %cst_9 : f32 to vector<128x128xf32>
    %22 = arith.subf %21, %10 : vector<128x128xf32>
    %23 = arith.mulf %22, %8 : vector<128x128xf32>
    %cst_10 = arith.constant 1.33333337 : f32
    %24 = vector.broadcast %cst_10 : f32 to vector<128x128xf32>
    %25 = arith.mulf %24, %10 : vector<128x128xf32>
    %cst_11 = arith.constant 1.000000e+00 : f32
    %26 = vector.broadcast %cst_11 : f32 to vector<128x128xf32>
    %27 = arith.addf %26, %25 : vector<128x128xf32>
    %28 = arith.mulf %27, %20 : vector<128x128xf32>
    %29 = arith.addf %23, %28 : vector<128x128xf32>
    %30 = vector.shape_cast %29 : vector<128x128xf32> to vector<16x8x128xf32>
    %cst_12 = arith.constant dense<0.000000e+00> : vector<8x128xf32>
    %31 = vector.multi_reduction <add>, %30, %cst_12 [0] : vector<16x8x128xf32> to vector<8x128xf32>
    %32 = vector.shape_cast %31 : vector<8x128xf32> to vector<1x8x128xf32>
    %33 = arith.addf %4, %32 : vector<1x8x128xf32>
    %c1_i32 = arith.constant 1 : i32
    %34 = arith.addf %3, %33 : vector<1x8x128xf32>
    %c0_13 = arith.constant 0 : index
    %c0_14 = arith.constant 0 : index
    %c0_15 = arith.constant 0 : index
    %35 = vector.load %arg4[%c0_13, %c0_14, %c0_15] : memref<1x8x128xf32, #tpu.memory_space<vmem>>, vector<1x8x128xf32>
    tpu.vector_store %arg4[%c0_13, %c0_14, %c0_15], %34 {strides = array<i32>} : memref<1x8x128xf32, #tpu.memory_space<vmem>>, vector<1x8x128xf32>,
    return
  }
  func.func @transform_0(%arg0: i32, %arg1: i32) -> (i32, i32) {
    %c1_i32 = arith.constant 1 : i32
    %0 = arith.muli %arg0, %c1_i32 : i32
    %1 = arith.addi %0, %arg1 : i32
    %c0_i32 = arith.constant 0 : i32
    %c0_i32_0 = arith.constant 0 : i32
    return %1, %c0_i32 : i32, i32
  }
  func.func @transform_1(%arg0: i32, %arg1: i32) -> (i32, i32) {
    %c1_i32 = arith.constant 1 : i32
    %0 = arith.muli %arg0, %c1_i32 : i32
    %1 = arith.addi %0, %arg1 : i32
    %c0_i32 = arith.constant 0 : i32
    %c0_i32_0 = arith.constant 0 : i32
    return %1, %c0_i32 : i32, i32
  }
  func.func @transform_2(%arg0: i32, %arg1: i32) -> (i32, i32, i32) {
    %c0_i32 = arith.constant 0 : i32
    %c0_i32_0 = arith.constant 0 : i32
    %c0_i32_1 = arith.constant 0 : i32
    return %arg0, %c0_i32, %c0_i32_0 : i32, i32, i32
  }
}

</mosaic_0001>

<llo_original>
// kernel: tpu_custom_call.1
$region0: #{tpu_custom_call.1}
  #allocation0 [shape = 'u32[]', space=smem, size = 0x4, offset = 0x4, fixed_abs, tag = 'smem constant byte address 0x4 - core index']
  #allocation1 [shape = 'u32[144,128]{1,0:T(1,128)}', space=vmem, size = 0x12000, scoped, tag = 'internal scratch']
  %s0 = inlined_call_operand.hbm [shape: f32[128,128], index: 0, kind: input, shape index: {}]
  %s1 = inlined_call_operand.hbm [shape: f32[128,128], index: 1, kind: input, shape index: {}]
  %s2 = inlined_call_operand.hbm [shape: f32[1,8,128], index: 2, kind: output, shape index: {}]
  %s3 = sld [smem:[#allocation0]]
  $region30: #{tpu_custom_call.1} parent=0
    _
  %s5 = ssub.s32 1, %s3
  %s6 = scalar_select 0, %s5, %s3
  $region1: #{tpu_custom_call.1} parent=0
    #allocation2 [shape = 'u8[65536]{0}', space=vmem, size = 0x10000, scoped, tag = 'input window, operand 0, single buffered']
    #allocation3 [shape = 's32[1]{0}', space=sflag, size = 0x4, scoped, tag = 'scoped memory for tpu_custom_call.1']
    #allocation4 [shape = 's32[1]{0}', space=sflag, size = 0x4, scoped, tag = 'scoped memory for tpu_custom_call.1']
    #allocation5 [shape = 'u8[65536]{0}', space=vmem, size = 0x10000, scoped, tag = 'input window, operand 1, single buffered']
    #allocation6 [shape = 's32[1]{0}', space=sflag, size = 0x4, scoped, tag = 'scoped memory for tpu_custom_call.1']
    #allocation7 [shape = 'u8[4096]{0}', space=vmem, size = 0x1000, scoped, tag = 'output window, operand 0, single buffered']
    %7 = vsyncpa [#allocation3], 0
    %8 = vsyncpa [#allocation6], 0
    %9 = vsyncpa [#allocation4], 0
    // Predicated region
    $region2: #{tpu_custom_call.1} parent=1 // pred_check
      _
    $region3: #{tpu_custom_call.1} parent=1 // pred_check_branch
      %11 = sbr.rel (0) target = $region5
    $region4: #{tpu_custom_call.1} parent=1 // pred_region
      %s12 = sadd.s32 0, 0
      %s13 = smul.u32 16, %s12
      %s15 = ssub.s32 2048, 2048
      %16 = vsyncadd [#allocation3], %s15
      %s17 = smul.addr %s13, 128
      %s18 = scalar_lea.hbm %s0, %s17
      %s19 = sshll.u32 [#allocation2], 4
      %s20 = int_to_ptr.vmem [resolvable:$true] %s19
      %25 = dma.hbm_to_vmem [thread:$0]  %s18, 2048, %s20, [#allocation3], 128, 128, 8
    $region5: #{tpu_custom_call.1} parent=1 // pred_fallthru
      _
    // Predicated region
    $region6: #{tpu_custom_call.1} parent=1 // pred_check
      _
    $region7: #{tpu_custom_call.1} parent=1 // pred_check_branch
      %27 = sbr.rel (0) target = $region9
    $region8: #{tpu_custom_call.1} parent=1 // pred_region
      %s28 = sadd.s32 0, 0
      %s29 = smul.u32 16, %s28
      %s31 = ssub.s32 2048, 2048
      %32 = vsyncadd [#allocation6], %s31
      %s33 = smul.addr %s29, 128
      %s34 = scalar_lea.hbm %s1, %s33
      %s35 = sshll.u32 [#allocation5], 4
      %s36 = int_to_ptr.vmem [resolvable:$true] %s35
      %41 = dma.hbm_to_vmem [thread:$0]  %s34, 2048, %s36, [#allocation6], 128, 128, 8
    $region9: #{tpu_custom_call.1} parent=1 // pred_fallthru
      _
    // Predicated region
    $region10: #{tpu_custom_call.1} parent=1 // pred_check
      _
    $region11: #{tpu_custom_call.1} parent=1 // pred_check_branch
      %43 = sbr.rel (0) target = $region13
    $region12: #{tpu_custom_call.1} parent=1 // pred_region
      %44 = dma.done [#allocation3], 2048
    $region13: #{tpu_custom_call.1} parent=1 // pred_fallthru
      _
    // Predicated region
    $region14: #{tpu_custom_call.1} parent=1 // pred_check
      _
    $region15: #{tpu_custom_call.1} parent=1 // pred_check_branch
      %46 = sbr.rel (0) target = $region17
    $region16: #{tpu_custom_call.1} parent=1 // pred_region
      %47 = dma.done [#allocation6], 2048
    $region17: #{tpu_custom_call.1} parent=1 // pred_fallthru
      _
    %s48 = sadd.s32 0, 0
    %s49 = smul.u32 16, %s48
    %s50 = sadd.s32 0, 0
    %s51 = smul.u32 16, %s50
    %p52 = scmp.eq.s32.totalorder 0, 0
    // Predicated region
    $region18: #{tpu_custom_call.1} parent=1 // pred_check
      %p53 = pneg %p52
    $region19: #{tpu_custom_call.1} parent=1 // pred_check_branch
      %55 = sbr.rel (%p53) target = $region21
    $region20: #{tpu_custom_call.1} parent=1 // pred_region
      %56 = vst [vmem:[#allocation7] sm:$0xff] 0.0
    $region21: #{tpu_custom_call.1} parent=1 // pred_fallthru
      _
    %v57 = vld [vmem:[#allocation7] sm:$0xff]
    %v58 = vld [vmem:[#allocation2] sm:$0xff]
    %v59 = vld [vmem:[#allocation2 + $0x8] sm:$0xff]
    %v60 = vld [vmem:[#allocation2 + $0x10] sm:$0xff]
    %v61 = vld [vmem:[#allocation2 + $0x18] sm:$0xff]
    %v62 = vld [vmem:[#allocation2 + $0x20] sm:$0xff]
    %v63 = vld [vmem:[#allocation2 + $0x28] sm:$0xff]
    %v64 = vld [vmem:[#allocation2 + $0x30] sm:$0xff]
    %v65 = vld [vmem:[#allocation2 + $0x38] sm:$0xff]
    %v66 = vld [vmem:[#allocation2 + $0x40] sm:$0xff]
    %v67 = vld [vmem:[#allocation2 + $0x48] sm:$0xff]
    %v68 = vld [vmem:[#allocation2 + $0x50] sm:$0xff]
    %v69 = vld [vmem:[#allocation2 + $0x58] sm:$0xff]
    %v70 = vld [vmem:[#allocation2 + $0x60] sm:$0xff]
    %v71 = vld [vmem:[#allocation2 + $0x68] sm:$0xff]
    %v72 = vld [vmem:[#allocation2 + $0x70] sm:$0xff]
    %v73 = vld [vmem:[#allocation2 + $0x78] sm:$0xff]
    %v74 = vld [vmem:[#allocation5] sm:$0xff]
    %v75 = vld [vmem:[#allocation5 + $0x8] sm:$0xff]
    %v76 = vld [vmem:[#allocation5 + $0x10] sm:$0xff]
    %v77 = vld [vmem:[#allocation5 + $0x18] sm:$0xff]
    %v78 = vld [vmem:[#allocation5 + $0x20] sm:$0xff]
    %v79 = vld [vmem:[#allocation5 + $0x28] sm:$0xff]
    %v80 = vld [vmem:[#allocation5 + $0x30] sm:$0xff]
    %v81 = vld [vmem:[#allocation5 + $0x38] sm:$0xff]
    %v82 = vld [vmem:[#allocation5 + $0x40] sm:$0xff]
    %v83 = vld [vmem:[#allocation5 + $0x48] sm:$0xff]
    %v84 = vld [vmem:[#allocation5 + $0x50] sm:$0xff]
    %v85 = vld [vmem:[#allocation5 + $0x58] sm:$0xff]
    %v86 = vld [vmem:[#allocation5 + $0x60] sm:$0xff]
    %v87 = vld [vmem:[#allocation5 + $0x68] sm:$0xff]
    %v88 = vld [vmem:[#allocation5 + $0x70] sm:$0xff]
    %v89 = vld [vmem:[#allocation5 + $0x78] sm:$0xff]
    %v90 = vsub.f32 0.0, %v58
    %v91 = vsub.f32 0.0, %v59
    %v92 = vsub.f32 0.0, %v60
    %v93 = vsub.f32 0.0, %v61
    %v94 = vsub.f32 0.0, %v62
    %v95 = vsub.f32 0.0, %v63
    %v96 = vsub.f32 0.0, %v64
    %v97 = vsub.f32 0.0, %v65
    %v98 = vsub.f32 0.0, %v66
    %v99 = vsub.f32 0.0, %v67
    %v100 = vsub.f32 0.0, %v68
    %v101 = vsub.f32 0.0, %v69
    %v102 = vsub.f32 0.0, %v70
    %v103 = vsub.f32 0.0, %v71
    %v104 = vsub.f32 0.0, %v72
    %v105 = vsub.f32 0.0, %v73
    %v106 = vmax.f32 %v90, 0.0
    %v107 = vmax.f32 %v91, 0.0
    %v108 = vmax.f32 %v92, 0.0
    %v109 = vmax.f32 %v93, 0.0
    %v110 = vmax.f32 %v94, 0.0
    %v111 = vmax.f32 %v95, 0.0
    %v112 = vmax.f32 %v96, 0.0
    %v113 = vmax.f32 %v97, 0.0
    %v114 = vmax.f32 %v98, 0.0
    %v115 = vmax.f32 %v99, 0.0
    %v116 = vmax.f32 %v100, 0.0
    %v117 = vmax.f32 %v101, 0.0
    %v118 = vmax.f32 %v102, 0.0
    %v119 = vmax.f32 %v103, 0.0
    %v120 = vmax.f32 %v104, 0.0
    %v121 = vmax.f32 %v105, 0.0
    %v122 = vand.u32 2147483647, %v58
    %v123 = vand.u32 2147483647, %v59
    %v124 = vand.u32 2147483647, %v60
    %v125 = vand.u32 2147483647, %v61
    %v126 = vand.u32 2147483647, %v62
    %v127 = vand.u32 2147483647, %v63
    %v128 = vand.u32 2147483647, %v64
    %v129 = vand.u32 2147483647, %v65
    %v130 = vand.u32 2147483647, %v66
    %v131 = vand.u32 2147483647, %v67
    %v132 = vand.u32 2147483647, %v68
    %v133 = vand.u32 2147483647, %v69
    %v134 = vand.u32 2147483647, %v70
    %v135 = vand.u32 2147483647, %v71
    %v136 = vand.u32 2147483647, %v72
    %v137 = vand.u32 2147483647, %v73
    %v138 = vsub.f32 0.0, %v122
    %v139 = vsub.f32 0.0, %v123
    %v140 = vsub.f32 0.0, %v124
    %v141 = vsub.f32 0.0, %v125
    %v142 = vsub.f32 0.0, %v126
    %v143 = vsub.f32 0.0, %v127
    %v144 = vsub.f32 0.0, %v128
    %v145 = vsub.f32 0.0, %v129
    %v146 = vsub.f32 0.0, %v130
    %v147 = vsub.f32 0.0, %v131
    %v148 = vsub.f32 0.0, %v132
    %v149 = vsub.f32 0.0, %v133
    %v150 = vsub.f32 0.0, %v134
    %v151 = vsub.f32 0.0, %v135
    %v152 = vsub.f32 0.0, %v136
    %v153 = vsub.f32 0.0, %v137
    %v154 = vmul.f32 %v138, 1.442695
    %v155 = vpow.pop %v154
    %v156 = vmul.f32 %v139, 1.442695
    %v157 = vpow.pop %v156
    %v158 = vmul.f32 %v140, 1.442695
    %v159 = vpow.pop %v158
    %v160 = vmul.f32 %v141, 1.442695
    %v161 = vpow.pop %v160
    %v162 = vmul.f32 %v142, 1.442695
    %v163 = vpow.pop %v162
    %v164 = vmul.f32 %v143, 1.442695
    %v165 = vpow.pop %v164
    %v166 = vmul.f32 %v144, 1.442695
    %v167 = vpow.pop %v166
    %v168 = vmul.f32 %v145, 1.442695
    %v169 = vpow.pop %v168
    %v170 = vmul.f32 %v146, 1.442695
    %v171 = vpow.pop %v170
    %v172 = vmul.f32 %v147, 1.442695
    %v173 = vpow.pop %v172
    %v174 = vmul.f32 %v148, 1.442695
    %v175 = vpow.pop %v174
    %v176 = vmul.f32 %v149, 1.442695
    %v177 = vpow.pop %v176
    %v178 = vmul.f32 %v150, 1.442695
    %v179 = vpow.pop %v178
    %v180 = vmul.f32 %v151, 1.442695
    %v181 = vpow.pop %v180
    %v182 = vmul.f32 %v152, 1.442695
    %v183 = vpow.pop %v182
    %v184 = vmul.f32 %v153, 1.442695
    %v185 = vpow.pop %v184
    %v186 = vadd.f32 %v155, 1.0
    %v187 = vlog2.pop %v186
    %v188 = vmul.f32 %v187, 0.6931472
    %v189 = vmul.f32 -0.5, %v155
    %v190 = vadd.f32 %v189, 1.0
    %v191 = vmul.f32 %v190, %v155
    %v192 = vand.u32 2147483647, %v155
    %vm193 = vcmp.lt.f32.partialorder %v192, 0.0004427343
    %v194 = vsel %vm193, %v191, %v188
    %v195 = vadd.f32 %v157, 1.0
    %v196 = vlog2.pop %v195
    %v197 = vmul.f32 %v196, 0.6931472
    %v198 = vmul.f32 -0.5, %v157
    %v199 = vadd.f32 %v198, 1.0
    %v200 = vmul.f32 %v199, %v157
    %v201 = vand.u32 2147483647, %v157
    %vm202 = vcmp.lt.f32.partialorder %v201, 0.0004427343
    %v203 = vsel %vm202, %v200, %v197
    %v204 = vadd.f32 %v159, 1.0
    %v205 = vlog2.pop %v204
    %v206 = vmul.f32 %v205, 0.6931472
    %v207 = vmul.f32 -0.5, %v159
    %v208 = vadd.f32 %v207, 1.0
    %v209 = vmul.f32 %v208, %v159
    %v210 = vand.u32 2147483647, %v159
    %vm211 = vcmp.lt.f32.partialorder %v210, 0.0004427343
    %v212 = vsel %vm211, %v209, %v206
    %v213 = vadd.f32 %v161, 1.0
    %v214 = vlog2.pop %v213
    %v215 = vmul.f32 %v214, 0.6931472
    %v216 = vmul.f32 -0.5, %v161
    %v217 = vadd.f32 %v216, 1.0
    %v218 = vmul.f32 %v217, %v161
    %v219 = vand.u32 2147483647, %v161
    %vm220 = vcmp.lt.f32.partialorder %v219, 0.0004427343
    %v221 = vsel %vm220, %v218, %v215
    %v222 = vadd.f32 %v163, 1.0
    %v223 = vlog2.pop %v222
    %v224 = vmul.f32 %v223, 0.6931472
    %v225 = vmul.f32 -0.5, %v163
    %v226 = vadd.f32 %v225, 1.0
    %v227 = vmul.f32 %v226, %v163
    %v228 = vand.u32 2147483647, %v163
    %vm229 = vcmp.lt.f32.partialorder %v228, 0.0004427343
    %v230 = vsel %vm229, %v227, %v224
    %v231 = vadd.f32 %v165, 1.0
    %v232 = vlog2.pop %v231
    %v233 = vmul.f32 %v232, 0.6931472
    %v234 = vmul.f32 -0.5, %v165
    %v235 = vadd.f32 %v234, 1.0
    %v236 = vmul.f32 %v235, %v165
    %v237 = vand.u32 2147483647, %v165
    %vm238 = vcmp.lt.f32.partialorder %v237, 0.0004427343
    %v239 = vsel %vm238, %v236, %v233
    %v240 = vadd.f32 %v167, 1.0
    %v241 = vlog2.pop %v240
    %v242 = vmul.f32 %v241, 0.6931472
    %v243 = vmul.f32 -0.5, %v167
    %v244 = vadd.f32 %v243, 1.0
    %v245 = vmul.f32 %v244, %v167
    %v246 = vand.u32 2147483647, %v167
    %vm247 = vcmp.lt.f32.partialorder %v246, 0.0004427343
    %v248 = vsel %vm247, %v245, %v242
    %v249 = vadd.f32 %v169, 1.0
    %v250 = vlog2.pop %v249
    %v251 = vmul.f32 %v250, 0.6931472
    %v252 = vmul.f32 -0.5, %v169
    %v253 = vadd.f32 %v252, 1.0
    %v254 = vmul.f32 %v253, %v169
    %v255 = vand.u32 2147483647, %v169
    %vm256 = vcmp.lt.f32.partialorder %v255, 0.0004427343
    %v257 = vsel %vm256, %v254, %v251
    %v258 = vadd.f32 %v171, 1.0
    %v259 = vlog2.pop %v258
    %v260 = vmul.f32 %v259, 0.6931472
    %v261 = vmul.f32 -0.5, %v171
    %v262 = vadd.f32 %v261, 1.0
    %v263 = vmul.f32 %v262, %v171
    %v264 = vand.u32 2147483647, %v171
    %vm265 = vcmp.lt.f32.partialorder %v264, 0.0004427343
    %v266 = vsel %vm265, %v263, %v260
    %v267 = vadd.f32 %v173, 1.0
    %v268 = vlog2.pop %v267
    %v269 = vmul.f32 %v268, 0.6931472
    %v270 = vmul.f32 -0.5, %v173
    %v271 = vadd.f32 %v270, 1.0
    %v272 = vmul.f32 %v271, %v173
    %v273 = vand.u32 2147483647, %v173
    %vm274 = vcmp.lt.f32.partialorder %v273, 0.0004427343
    %v275 = vsel %vm274, %v272, %v269
    %v276 = vadd.f32 %v175, 1.0
    %v277 = vlog2.pop %v276
    %v278 = vmul.f32 %v277, 0.6931472
    %v279 = vmul.f32 -0.5, %v175
    %v280 = vadd.f32 %v279, 1.0
    %v281 = vmul.f32 %v280, %v175
    %v282 = vand.u32 2147483647, %v175
    %vm283 = vcmp.lt.f32.partialorder %v282, 0.0004427343
    %v284 = vsel %vm283, %v281, %v278
    %v285 = vadd.f32 %v177, 1.0
    %v286 = vlog2.pop %v285
    %v287 = vmul.f32 %v286, 0.6931472
    %v288 = vmul.f32 -0.5, %v177
    %v289 = vadd.f32 %v288, 1.0
    %v290 = vmul.f32 %v289, %v177
    %v291 = vand.u32 2147483647, %v177
    %vm292 = vcmp.lt.f32.partialorder %v291, 0.0004427343
    %v293 = vsel %vm292, %v290, %v287
    %v294 = vadd.f32 %v179, 1.0
    %v295 = vlog2.pop %v294
    %v296 = vmul.f32 %v295, 0.6931472
    %v297 = vmul.f32 -0.5, %v179
    %v298 = vadd.f32 %v297, 1.0
    %v299 = vmul.f32 %v298, %v179
    %v300 = vand.u32 2147483647, %v179
    %vm301 = vcmp.lt.f32.partialorder %v300, 0.0004427343
    %v302 = vsel %vm301, %v299, %v296
    %v303 = vadd.f32 %v181, 1.0
    %v304 = vlog2.pop %v303
    %v305 = vmul.f32 %v304, 0.6931472
    %v306 = vmul.f32 -0.5, %v181
    %v307 = vadd.f32 %v306, 1.0
    %v308 = vmul.f32 %v307, %v181
    %v309 = vand.u32 2147483647, %v181
    %vm310 = vcmp.lt.f32.partialorder %v309, 0.0004427343
    %v311 = vsel %vm310, %v308, %v305
    %v312 = vadd.f32 %v183, 1.0
    %v313 = vlog2.pop %v312
    %v314 = vmul.f32 %v313, 0.6931472
    %v315 = vmul.f32 -0.5, %v183
    %v316 = vadd.f32 %v315, 1.0
    %v317 = vmul.f32 %v316, %v183
    %v318 = vand.u32 2147483647, %v183
    %vm319 = vcmp.lt.f32.partialorder %v318, 0.0004427343
    %v320 = vsel %vm319, %v317, %v314
    %v321 = vadd.f32 %v185, 1.0
    %v322 = vlog2.pop %v321
    %v323 = vmul.f32 %v322, 0.6931472
    %v324 = vmul.f32 -0.5, %v185
    %v325 = vadd.f32 %v324, 1.0
    %v326 = vmul.f32 %v325, %v185
    %v327 = vand.u32 2147483647, %v185
    %vm328 = vcmp.lt.f32.partialorder %v327, 0.0004427343
    %v329 = vsel %vm328, %v326, %v323
    %v330 = vadd.f32 %v106, %v194
    %v331 = vadd.f32 %v107, %v203
    %v332 = vadd.f32 %v108, %v212
    %v333 = vadd.f32 %v109, %v221
    %v334 = vadd.f32 %v110, %v230
    %v335 = vadd.f32 %v111, %v239
    %v336 = vadd.f32 %v112, %v248
    %v337 = vadd.f32 %v113, %v257
    %v338 = vadd.f32 %v114, %v266
    %v339 = vadd.f32 %v115, %v275
    %v340 = vadd.f32 %v116, %v284
    %v341 = vadd.f32 %v117, %v293
    %v342 = vadd.f32 %v118, %v302
    %v343 = vadd.f32 %v119, %v311
    %v344 = vadd.f32 %v120, %v320
    %v345 = vadd.f32 %v121, %v329
    %v346 = vsub.f32 1.0, %v74
    %v347 = vsub.f32 1.0, %v75
    %v348 = vsub.f32 1.0, %v76
    %v349 = vsub.f32 1.0, %v77
    %v350 = vsub.f32 1.0, %v78
    %v351 = vsub.f32 1.0, %v79
    %v352 = vsub.f32 1.0, %v80
    %v353 = vsub.f32 1.0, %v81
    %v354 = vsub.f32 1.0, %v82
    %v355 = vsub.f32 1.0, %v83
    %v356 = vsub.f32 1.0, %v84
    %v357 = vsub.f32 1.0, %v85
    %v358 = vsub.f32 1.0, %v86
    %v359 = vsub.f32 1.0, %v87
    %v360 = vsub.f32 1.0, %v88
    %v361 = vsub.f32 1.0, %v89
    %v362 = vmul.f32 %v346, %v58
    %v363 = vmul.f32 %v347, %v59
    %v364 = vmul.f32 %v348, %v60
    %v365 = vmul.f32 %v349, %v61
    %v366 = vmul.f32 %v350, %v62
    %v367 = vmul.f32 %v351, %v63
    %v368 = vmul.f32 %v352, %v64
    %v369 = vmul.f32 %v353, %v65
    %v370 = vmul.f32 %v354, %v66
    %v371 = vmul.f32 %v355, %v67
    %v372 = vmul.f32 %v356, %v68
    %v373 = vmul.f32 %v357, %v69
    %v374 = vmul.f32 %v358, %v70
    %v375 = vmul.f32 %v359, %v71
    %v376 = vmul.f32 %v360, %v72
    %v377 = vmul.f32 %v361, %v73
    %v378 = vmul.f32 %v74, 1.3333334
    %v379 = vmul.f32 %v75, 1.3333334
    %v380 = vmul.f32 %v76, 1.3333334
    %v381 = vmul.f32 %v77, 1.3333334
    %v382 = vmul.f32 %v78, 1.3333334
    %v383 = vmul.f32 %v79, 1.3333334
    %v384 = vmul.f32 %v80, 1.3333334
    %v385 = vmul.f32 %v81, 1.3333334
    %v386 = vmul.f32 %v82, 1.3333334
    %v387 = vmul.f32 %v83, 1.3333334
    %v388 = vmul.f32 %v84, 1.3333334
    %v389 = vmul.f32 %v85, 1.3333334
    %v390 = vmul.f32 %v86, 1.3333334
    %v391 = vmul.f32 %v87, 1.3333334
    %v392 = vmul.f32 %v88, 1.3333334
    %v393 = vmul.f32 %v89, 1.3333334
    %v394 = vadd.f32 %v378, 1.0
    %v395 = vadd.f32 %v379, 1.0
    %v396 = vadd.f32 %v380, 1.0
    %v397 = vadd.f32 %v381, 1.0
    %v398 = vadd.f32 %v382, 1.0
    %v399 = vadd.f32 %v383, 1.0
    %v400 = vadd.f32 %v384, 1.0
    %v401 = vadd.f32 %v385, 1.0
    %v402 = vadd.f32 %v386, 1.0
    %v403 = vadd.f32 %v387, 1.0
    %v404 = vadd.f32 %v388, 1.0
    %v405 = vadd.f32 %v389, 1.0
    %v406 = vadd.f32 %v390, 1.0
    %v407 = vadd.f32 %v391, 1.0
    %v408 = vadd.f32 %v392, 1.0
    %v409 = vadd.f32 %v393, 1.0
    %v410 = vmul.f32 %v394, %v330
    %v411 = vmul.f32 %v395, %v331
    %v412 = vmul.f32 %v396, %v332
    %v413 = vmul.f32 %v397, %v333
    %v414 = vmul.f32 %v398, %v334
    %v415 = vmul.f32 %v399, %v335
    %v416 = vmul.f32 %v400, %v336
    %v417 = vmul.f32 %v401, %v337
    %v418 = vmul.f32 %v402, %v338
    %v419 = vmul.f32 %v403, %v339
    %v420 = vmul.f32 %v404, %v340
    %v421 = vmul.f32 %v405, %v341
    %v422 = vmul.f32 %v406, %v342
    %v423 = vmul.f32 %v407, %v343
    %v424 = vmul.f32 %v408, %v344
    %v425 = vmul.f32 %v409, %v345
    %v426 = vadd.f32 %v362, %v410
    %v427 = vadd.f32 %v363, %v411
    %v428 = vadd.f32 %v364, %v412
    %v429 = vadd.f32 %v365, %v413
    %v430 = vadd.f32 %v366, %v414
    %v431 = vadd.f32 %v367, %v415
    %v432 = vadd.f32 %v368, %v416
    %v433 = vadd.f32 %v369, %v417
    %v434 = vadd.f32 %v370, %v418
    %v435 = vadd.f32 %v371, %v419
    %v436 = vadd.f32 %v372, %v420
    %v437 = vadd.f32 %v373, %v421
    %v438 = vadd.f32 %v374, %v422
    %v439 = vadd.f32 %v375, %v423
    %v440 = vadd.f32 %v376, %v424
    %v441 = vadd.f32 %v377, %v425
    %v442 = vadd.f32 %v426, %v427
    %v443 = vadd.f32 %v442, %v428
    %v444 = vadd.f32 %v443, %v429
    %v445 = vadd.f32 %v444, %v430
    %v446 = vadd.f32 %v445, %v431
    %v447 = vadd.f32 %v446, %v432
    %v448 = vadd.f32 %v447, %v433
    %v449 = vadd.f32 %v448, %v434
    %v450 = vadd.f32 %v449, %v435
    %v451 = vadd.f32 %v450, %v436
    %v452 = vadd.f32 %v451, %v437
    %v453 = vadd.f32 %v452, %v438
    %v454 = vadd.f32 %v453, %v439
    %v455 = vadd.f32 %v454, %v440
    %v456 = vadd.f32 %v455, %v441
    %v457 = vadd.f32 %v456, 0.0
    %v458 = vadd.f32 %v57, %v457
    %459 = vst [vmem:[#allocation7] sm:$0xff] %v458
    // Predicated region
    $region22: #{tpu_custom_call.1} parent=1 // pred_check
      _
    $region23: #{tpu_custom_call.1} parent=1 // pred_check_branch
      %461 = sbr.rel (0) target = $region25
    $region24: #{tpu_custom_call.1} parent=1 // pred_region
      %s463 = ssub.s32 128, 128
      %464 = vsyncadd [#allocation4], %s463
      %s466 = sshll.u32 [#allocation7], 4
      %s467 = int_to_ptr.vmem [resolvable:$true] %s466
      %469 = dma.vmem_to_hbm [thread:$0]  %s467, 128, %s2, [#allocation4]
    $region25: #{tpu_custom_call.1} parent=1 // pred_fallthru
      _
    // Predicated region
    $region26: #{tpu_custom_call.1} parent=1 // pred_check
      _
    $region27: #{tpu_custom_call.1} parent=1 // pred_check_branch
      %471 = sbr.rel (0) target = $region29
    $region28: #{tpu_custom_call.1} parent=1 // pred_region
      %472 = dma.done [#allocation4], 128
    $region29: #{tpu_custom_call.1} parent=1 // pred_fallthru
      _
    %473 = vsyncpa [#allocation3], 1
    %474 = vsyncpa [#allocation6], 1
    %475 = vsyncpa [#allocation4], 1

</llo_original>
